<compile_context>
chip_gen: v7x
topology: tpu7x:2x2x1
jax: 0.10.0
libtpu: 0.0.40
codegen_flags: <defaults>
</compile_context>

<pallas_src>
import functools

import jax
import jax.numpy as jnp
from jax.experimental import pallas as pl
from jax.experimental.pallas import tpu as pltpu

EPS = 1e-20
_LANE_TILE_CAP = 2048          # hw-tile width per grid step (multiple of 128)


# ---------------------------------------------------------------------------
# Fused Pallas kernel
# ---------------------------------------------------------------------------
def _reweight_kernel(wd_ref, we_ref, d_ref, d1_ref, cd_ref, e_ref, ce_ref,
                     cd_out_ref, ce1_ref, ece_ref, *, n_dirs):
    """Fused SNCrec confidence re-weighting.

    cd_out = cd * clamp(d1 / (d + eps), max=1) ** w_pow_d
    ce1    = ce ** w_pow_e[dir]      (dir = row % n_dirs, dir folded into rows)
    ece    = e * ce1
    """
    # ---- depth-confidence update -------------------------------------------
    wd = wd_ref[0, 0]                                    # scalar from SMEM
    ratio = jnp.minimum(
        d1_ref[...] * pl.reciprocal(d_ref[...] + EPS, approx=True), 1.0)
    # pow with a runtime exponent == exp(w * log(x)); explicit guard so the
    # zero-depth-hole path (ratio == 0) is deterministically 0, matching
    # torch.pow(0, w > 0) == 0.
    pow_d = jnp.where(ratio > 0.0, jnp.exp(wd * jnp.log(ratio)), 0.0)
    cd_out_ref[...] = cd_ref[...] * pow_d

    # ---- edge-confidence re-weighting --------------------------------------
    n_rows = ce_ref.shape[0]                             # == B*C*n_dirs
    row_dir = jax.lax.broadcasted_iota(jnp.int32, (n_rows, 1), 0) % n_dirs
    we_col = jnp.full((n_rows, 1), we_ref[0, 0], dtype=jnp.float32)
    for k in range(1, n_dirs):                           # hoisted per grid step
        we_col = jnp.where(row_dir == k, we_ref[0, k], we_col)

    ce = ce_ref[...]
    ce1 = jnp.where(ce > 0.0, jnp.exp(we_col * jnp.log(ce)), 0.0)
    ce1_ref[...] = ce1
    ece_ref[...] = e_ref[...] * ce1


# ---------------------------------------------------------------------------
# Pallas wrapper
# ---------------------------------------------------------------------------
def sncrec_reweight_pallas(d, d1, cd, e, ce, w_pow_d, w_pow_e):
    """Returns (cd_new, ce1, ece) in the original (N, C, ...) layouts."""
    B, C, H, W = d.shape
    Dr = e.shape[2]                                      # 4 directions
    rd, re, hw = B * C, B * C * Dr, H * W

    d2 = d.reshape(rd, hw).astype(jnp.float32)
    d12 = d1.reshape(rd, hw).astype(jnp.float32)
    cd2 = cd.reshape(rd, hw).astype(jnp.float32)
    e2 = e.reshape(re, hw).astype(jnp.float32)           # free reshape; dir = row % Dr
    ce2 = ce.reshape(re, hw).astype(jnp.float32)
    wd = jnp.asarray(w_pow_d, jnp.float32).reshape(1, 1)
    we = jnp.asarray(w_pow_e, jnp.float32).reshape(1, Dr)

    # Tile the lane-dense hw axis; rows (B*C) stay full-extent (small for
    # depth completion).  tile_hw is either the full hw or a multiple of 128.
    tile_hw = hw if hw <= _LANE_TILE_CAP else _LANE_TILE_CAP
    grid = (pl.cdiv(hw, tile_hw),)

    smem = pl.BlockSpec(memory_space=pltpu.MemorySpace.SMEM)
    d_spec = pl.BlockSpec((rd, tile_hw), lambda i: (0, i))
    e_spec = pl.BlockSpec((re, tile_hw), lambda i: (0, i))

    # 4 depth-like + 4 edge-like streams per step, double-buffered by Pallas.
    tile_bytes = (4 * rd + 4 * re) * tile_hw * 4
    vmem_limit = int(min(32 * 2**20, max(8 * 2**20, 4 * tile_bytes)))

    cd_new, ce1, ece = pl.pallas_call(
        functools.partial(_reweight_kernel, n_dirs=Dr),
        out_shape=(jax.ShapeDtypeStruct((rd, hw), jnp.float32),
                   jax.ShapeDtypeStruct((re, hw), jnp.float32),
                   jax.ShapeDtypeStruct((re, hw), jnp.float32)),
        grid=grid,
        in_specs=[smem, smem, d_spec, d_spec, d_spec, e_spec, e_spec],
        out_specs=(d_spec, e_spec, e_spec),
        # cd and ce are dead after this call -> update them in place.
        input_output_aliases={4: 0, 6: 1},
        compiler_params=pltpu.CompilerParams(
            dimension_semantics=("parallel",),
            vmem_limit_bytes=vmem_limit),
    )(wd, we, d2, d12, cd2, e2, ce2)

    return (cd_new.reshape(B, C, H, W),
            ce1.reshape(B, C, Dr, H, W),
            ece.reshape(B, C, Dr, H, W))


# ---------------------------------------------------------------------------
# Pure-JAX reference of the re-weighting (for correctness checking)
# ---------------------------------------------------------------------------
def _reweight_ref(d, d1, cd, e, ce, w_pow_d, w_pow_e):
    ratio = jnp.minimum(d1 / (d + EPS), 1.0)
    cd_new = cd * jnp.power(ratio, w_pow_d)
    ce1 = jnp.power(ce, w_pow_e)
    return cd_new, ce1, e * ce1


# ---------------------------------------------------------------------------
# SNCrec module pieces (plain-JAX glue)
# ---------------------------------------------------------------------------
def prepare_weights(params):
    w_pow_d = jax.nn.softplus(params["w_pow_d"])                 # (1,1,1,1)
    w_pow_e = jax.nn.softplus(params["w_pow_e"])                 # (1,1,3,1,1)
    # torch.cat((w_pow_e[:, :, 1, None, ...], w_pow_e), 2) -> (1,1,4,1,1)
    w_pow_e = jnp.concatenate([w_pow_e[:, :, 1:2], w_pow_e], axis=2)
    return w_pow_d, w_pow_e


def surrogate_inner_model(d, cd, ece, ce):
    # TODO(synk): real inner_model is dynamically imported via importlib and is
    # unknown here; deterministic elementwise surrogate producing the same
    # output structure ({'d', 'e', 'ce'}) so the SNCrec recurrence is exercised.
    d_out = d * 0.9 + 0.1 * jnp.mean(d)
    dirs = jnp.arange(4, dtype=jnp.float32).reshape(1, 1, 4, 1, 1)
    base = d[:, :, None, :, :]                                   # (B,C,1,H,W)
    if ece is not None and ce is not None:
        base = base + 0.01 * ece - 0.01 * ce
    e_out = jnp.tanh(0.1 * base + 0.1 * dirs)
    ce_out = jax.nn.sigmoid(0.05 * base + 0.2 * dirs)
    if cd is not None:
        d_out = cd * d + (1.0 - cd) * d_out
    return {"d": d_out, "e": e_out, "ce": ce_out}


def sncrec_forward(params, d, cd=None):
    w_pow_d, w_pow_e = prepare_weights(params)
    if cd is None:
        cd = (d > 0).astype(jnp.float32)

    # first inner-model pass (torch runs it under no_grad; inference-only here)
    outs1 = surrogate_inner_model(d, cd, None, None)

    # --- SNCrec hot path: fused Pallas re-weighting kernel ---
    cd2, ce1, ece = sncrec_reweight_pallas(
        d, outs1["d"], cd, outs1["e"], outs1["ce"], w_pow_d, w_pow_e)

    # second inner-model pass with re-weighted confidences
    outs2 = surrogate_inner_model(d, cd2, ece, ce1)
    return outs2


# ---------------------------------------------------------------------------
if __name__ == "__main__":
    key = jax.random.PRNGKey(0)
    k1, k2, k3, k4 = jax.random.split(key, 4)

    B, C, H, W = 2, 1, 64, 64            # hw=4096 -> 2 grid steps of 2048 lanes
    params = {
        "w_pow_d": jax.random.uniform(k1, (1, 1, 1, 1), jnp.float32),
        "w_pow_e": jax.random.uniform(k2, (1, 1, 3, 1, 1), jnp.float32),
    }

    # sparse lidar-like depth: positive values with ~50% holes
    d = jax.random.uniform(k3, (B, C, H, W), jnp.float32) * 10.0
    mask = (jax.random.uniform(k4, (B, C, H, W)) > 0.5).astype(jnp.float32)
    d = d * mask

    # --- correctness: fused Pallas re-weighting vs pure-JAX reference ---
    w_pow_d, w_pow_e = prepare_weights(params)
    cd0 = (d > 0).astype(jnp.float32)
    outs1 = surrogate_inner_model(d, cd0, None, None)
    got = jax.jit(sncrec_reweight_pallas)(
        d, outs1["d"], cd0, outs1["e"], outs1["ce"], w_pow_d, w_pow_e)
    want = _reweight_ref(d, outs1["d"], cd0, outs1["e"], outs1["ce"],
                         w_pow_d, w_pow_e)
    for g, w in zip(got, want):
        err = float(jnp.max(jnp.abs(g - w)))
        assert jnp.allclose(g, w, rtol=2e-2, atol=1e-3), err

    # --- full forward ---
    fwd = jax.jit(sncrec_forward)
    outs = fwd(params, d)
    jax.block_until_ready(outs)

    assert outs["d"].shape == (B, C, H, W)
    assert outs["e"].shape == (B, C, 4, H, W)
    assert outs["ce"].shape == (B, C, 4, H, W)
    print("KERNEL_OK")
</pallas_src>

<mosaic_0001>
module attributes {stable_mosaic.version = 11 : i64} {
  func.func @_reweight_kernel(%arg0: i32, %arg1: memref<1x1xf32, #tpu.memory_space<smem>>, %arg2: memref<1x4xf32, #tpu.memory_space<smem>>, %arg3: memref<2x2048xf32, #tpu.memory_space<vmem>>, %arg4: memref<2x2048xf32, #tpu.memory_space<vmem>>, %arg5: memref<2x2048xf32, #tpu.memory_space<vmem>>, %arg6: memref<8x2048xf32, #tpu.memory_space<vmem>>, %arg7: memref<8x2048xf32, #tpu.memory_space<vmem>>, %arg8: memref<2x2048xf32, #tpu.memory_space<vmem>>, %arg9: memref<8x2048xf32, #tpu.memory_space<vmem>>, %arg10: memref<8x2048xf32, #tpu.memory_space<vmem>>) attributes {dimension_semantics = [#tpu.dimension_semantics<parallel>], iteration_bounds = array<i64: 2>, scalar_prefetch = 0 : i64, scratch_operands = 0 : i64, tpu.core_type = #tpu.core_type<tc>, window_params = [{transform_indices = @transform_0, window_bounds = array<i64: 1, 1>}, {transform_indices = @transform_1, window_bounds = array<i64: 1, 4>}, {transform_indices = @transform_2, window_bounds = array<i64: 2, 2048>}, {transform_indices = @transform_3, window_bounds = array<i64: 2, 2048>}, {transform_indices = @transform_4, window_bounds = array<i64: 2, 2048>}, {transform_indices = @transform_5, window_bounds = array<i64: 8, 2048>}, {transform_indices = @transform_6, window_bounds = array<i64: 8, 2048>}, {transform_indices = @transform_7, window_bounds = array<i64: 2, 2048>}, {transform_indices = @transform_8, window_bounds = array<i64: 8, 2048>}, {transform_indices = @transform_9, window_bounds = array<i64: 8, 2048>}]} {
    %c0 = arith.constant 0 : index
    %c0_0 = arith.constant 0 : index
    %0 = memref.load %arg1[%c0, %c0_0] : memref<1x1xf32, #tpu.memory_space<smem>>
    %c0_1 = arith.constant 0 : index
    %c0_2 = arith.constant 0 : index
    %1 = vector.load %arg4[%c0_1, %c0_2] : memref<2x2048xf32, #tpu.memory_space<vmem>>, vector<2x2048xf32>
    %c0_3 = arith.constant 0 : index
    %c0_4 = arith.constant 0 : index
    %2 = vector.load %arg3[%c0_3, %c0_4] : memref<2x2048xf32, #tpu.memory_space<vmem>>, vector<2x2048xf32>
    %cst = arith.constant 9.99999968E-21 : f32
    %3 = vector.broadcast %cst : f32 to vector<2x2048xf32>
    %4 = arith.addf %2, %3 : vector<2x2048xf32>
    %5 = tpu.reciprocal %4 {approx = true} : vector<2x2048xf32> -> vector<2x2048xf32>
    %6 = arith.mulf %1, %5 : vector<2x2048xf32>
    %cst_5 = arith.constant 1.000000e+00 : f32
    %7 = vector.broadcast %cst_5 : f32 to vector<2x2048xf32>
    %8 = arith.minimumf %6, %7 : vector<2x2048xf32>
    %cst_6 = arith.constant 0.000000e+00 : f32
    %9 = vector.broadcast %cst_6 : f32 to vector<2x2048xf32>
    %10 = arith.cmpf ogt, %8, %9 : vector<2x2048xf32>
    %11 = math.log %8 : vector<2x2048xf32>
    %12 = vector.broadcast %0 : f32 to vector<2x2048xf32>
    %13 = arith.mulf %12, %11 : vector<2x2048xf32>
    %14 = math.exp %13 : vector<2x2048xf32>
    %cst_7 = arith.constant 0.000000e+00 : f32
    %15 = vector.broadcast %cst_7 : f32 to vector<2x2048xf32>
    %16 = arith.select %10, %14, %15 : vector<2x2048xi1>, vector<2x2048xf32>
    %c0_8 = arith.constant 0 : index
    %c0_9 = arith.constant 0 : index
    %17 = vector.load %arg5[%c0_8, %c0_9] : memref<2x2048xf32, #tpu.memory_space<vmem>>, vector<2x2048xf32>
    %18 = arith.mulf %17, %16 : vector<2x2048xf32>
    %c0_10 = arith.constant 0 : index
    %c0_11 = arith.constant 0 : index
    %19 = vector.load %arg8[%c0_10, %c0_11] : memref<2x2048xf32, #tpu.memory_space<vmem>>, vector<2x2048xf32>
    tpu.vector_store %arg8[%c0_10, %c0_11], %18 {strides = array<i32>} : memref<2x2048xf32, #tpu.memory_space<vmem>>, vector<2x2048xf32>,
    %20 = tpu.iota {dimensions = array<i32: 0>} : vector<8x1xi32>
    %c4_i32 = arith.constant 4 : i32
    %c0_i32 = arith.constant 0 : i32
    %21 = arith.cmpi eq, %c4_i32, %c0_i32 : i32
    %c1_i32 = arith.constant 1 : i32
    %22 = arith.select %21, %c1_i32, %c4_i32 : i32
    %23 = vector.broadcast %22 : i32 to vector<8x1xi32>
    %24 = arith.remsi %20, %23 : vector<8x1xi32>
    %c0_i32_12 = arith.constant 0 : i32
    %25 = vector.broadcast %c0_i32_12 : i32 to vector<8x1xi32>
    %26 = arith.cmpi ne, %24, %25 : vector<8x1xi32>
    %c0_i32_13 = arith.constant 0 : i32
    %27 = vector.broadcast %c0_i32_13 : i32 to vector<8x1xi32>
    %28 = arith.cmpi slt, %24, %27 : vector<8x1xi32>
    %c0_i32_14 = arith.constant 0 : i32
    %29 = arith.cmpi slt, %22, %c0_i32_14 : i32
    %30 = vector.broadcast %29 : i1 to vector<8x1xi1>
    %31 = vector.broadcast %30 : vector<8x1xi1> to vector<8x1xi1>
    %32 = arith.xori %28, %31 : vector<8x1xi1>
    %33 = arith.andi %32, %26 : vector<8x1xi1>
    %34 = vector.broadcast %22 : i32 to vector<8x1xi32>
    %35 = arith.addi %24, %34 : vector<8x1xi32>
    %36 = arith.select %33, %35, %24 : vector<8x1xi1>, vector<8x1xi32>
    %c0_15 = arith.constant 0 : index
    %c0_16 = arith.constant 0 : index
    %37 = memref.load %arg2[%c0_15, %c0_16] : memref<1x4xf32, #tpu.memory_space<smem>>
    %38 = vector.broadcast %37 : f32 to vector<8x1xf32>
    %c1_i32_17 = arith.constant 1 : i32
    %39 = vector.broadcast %c1_i32_17 : i32 to vector<8x1xi32>
    %40 = arith.cmpi eq, %36, %39 : vector<8x1xi32>
    %c0_18 = arith.constant 0 : index
    %c1 = arith.constant 1 : index
    %41 = memref.load %arg2[%c0_18, %c1] : memref<1x4xf32, #tpu.memory_space<smem>>
    %42 = vector.broadcast %41 : f32 to vector<8x1xf32>
    %43 = arith.select %40, %42, %38 : vector<8x1xi1>, vector<8x1xf32>
    %c2_i32 = arith.constant 2 : i32
    %44 = vector.broadcast %c2_i32 : i32 to vector<8x1xi32>
    %45 = arith.cmpi eq, %36, %44 : vector<8x1xi32>
    %c0_19 = arith.constant 0 : index
    %c2 = arith.constant 2 : index
    %46 = memref.load %arg2[%c0_19, %c2] : memref<1x4xf32, #tpu.memory_space<smem>>
    %47 = vector.broadcast %46 : f32 to vector<8x1xf32>
    %48 = arith.select %45, %47, %43 : vector<8x1xi1>, vector<8x1xf32>
    %c3_i32 = arith.constant 3 : i32
    %49 = vector.broadcast %c3_i32 : i32 to vector<8x1xi32>
    %50 = arith.cmpi eq, %36, %49 : vector<8x1xi32>
    %c0_20 = arith.constant 0 : index
    %c3 = arith.constant 3 : index
    %51 = memref.load %arg2[%c0_20, %c3] : memref<1x4xf32, #tpu.memory_space<smem>>
    %52 = vector.broadcast %51 : f32 to vector<8x1xf32>
    %53 = arith.select %50, %52, %48 : vector<8x1xi1>, vector<8x1xf32>
    %c0_21 = arith.constant 0 : index
    %c0_22 = arith.constant 0 : index
    %54 = vector.load %arg7[%c0_21, %c0_22] : memref<8x2048xf32, #tpu.memory_space<vmem>>, vector<8x2048xf32>
    %cst_23 = arith.constant 0.000000e+00 : f32
    %55 = vector.broadcast %cst_23 : f32 to vector<8x2048xf32>
    %56 = arith.cmpf ogt, %54, %55 : vector<8x2048xf32>
    %57 = math.log %54 : vector<8x2048xf32>
    %58 = vector.broadcast %53 : vector<8x1xf32> to vector<8x2048xf32>
    %59 = arith.mulf %58, %57 : vector<8x2048xf32>
    %60 = math.exp %59 : vector<8x2048xf32>
    %cst_24 = arith.constant 0.000000e+00 : f32
    %61 = vector.broadcast %cst_24 : f32 to vector<8x2048xf32>
    %62 = arith.select %56, %60, %61 : vector<8x2048xi1>, vector<8x2048xf32>
    %c0_25 = arith.constant 0 : index
    %c0_26 = arith.constant 0 : index
    %63 = vector.load %arg9[%c0_25, %c0_26] : memref<8x2048xf32, #tpu.memory_space<vmem>>, vector<8x2048xf32>
    tpu.vector_store %arg9[%c0_25, %c0_26], %62 {strides = array<i32>} : memref<8x2048xf32, #tpu.memory_space<vmem>>, vector<8x2048xf32>,
    %c0_27 = arith.constant 0 : index
    %c0_28 = arith.constant 0 : index
    %64 = vector.load %arg6[%c0_27, %c0_28] : memref<8x2048xf32, #tpu.memory_space<vmem>>, vector<8x2048xf32>
    %65 = arith.mulf %64, %62 : vector<8x2048xf32>
    %c0_29 = arith.constant 0 : index
    %c0_30 = arith.constant 0 : index
    %66 = vector.load %arg10[%c0_29, %c0_30] : memref<8x2048xf32, #tpu.memory_space<vmem>>, vector<8x2048xf32>
    tpu.vector_store %arg10[%c0_29, %c0_30], %65 {strides = array<i32>} : memref<8x2048xf32, #tpu.memory_space<vmem>>, vector<8x2048xf32>,
    return
  }
  func.func @transform_0(%arg0: i32) -> (i32, i32) {
    %c0_i32 = arith.constant 0 : i32
    %c0_i32_0 = arith.constant 0 : i32
    %c0_i32_1 = arith.constant 0 : i32
    return %c0_i32, %c0_i32_0 : i32, i32
  }
  func.func @transform_1(%arg0: i32) -> (i32, i32) {
    %c0_i32 = arith.constant 0 : i32
    %c0_i32_0 = arith.constant 0 : i32
    %c0_i32_1 = arith.constant 0 : i32
    return %c0_i32, %c0_i32_0 : i32, i32
  }
  func.func @transform_2(%arg0: i32) -> (i32, i32) {
    %c0_i32 = arith.constant 0 : i32
    %c0_i32_0 = arith.constant 0 : i32
    return %c0_i32, %arg0 : i32, i32
  }
  func.func @transform_3(%arg0: i32) -> (i32, i32) {
    %c0_i32 = arith.constant 0 : i32
    %c0_i32_0 = arith.constant 0 : i32
    return %c0_i32, %arg0 : i32, i32
  }
  func.func @transform_4(%arg0: i32) -> (i32, i32) {
    %c0_i32 = arith.constant 0 : i32
    %c0_i32_0 = arith.constant 0 : i32
    return %c0_i32, %arg0 : i32, i32
  }
  func.func @transform_5(%arg0: i32) -> (i32, i32) {
    %c0_i32 = arith.constant 0 : i32
    %c0_i32_0 = arith.constant 0 : i32
    return %c0_i32, %arg0 : i32, i32
  }
  func.func @transform_6(%arg0: i32) -> (i32, i32) {
    %c0_i32 = arith.constant 0 : i32
    %c0_i32_0 = arith.constant 0 : i32
    return %c0_i32, %arg0 : i32, i32
  }
  func.func @transform_7(%arg0: i32) -> (i32, i32) {
    %c0_i32 = arith.constant 0 : i32
    %c0_i32_0 = arith.constant 0 : i32
    return %c0_i32, %arg0 : i32, i32
  }
  func.func @transform_8(%arg0: i32) -> (i32, i32) {
    %c0_i32 = arith.constant 0 : i32
    %c0_i32_0 = arith.constant 0 : i32
    return %c0_i32, %arg0 : i32, i32
  }
  func.func @transform_9(%arg0: i32) -> (i32, i32) {
    %c0_i32 = arith.constant 0 : i32
    %c0_i32_0 = arith.constant 0 : i32
    return %c0_i32, %arg0 : i32, i32
  }
}

</mosaic_0001>

<llo_original>
// kernel: sncrec_reweight_pallas.1
$region0: #{sncrec_reweight_pallas.1}
  #allocation0 [shape = 'u32[]', space=smem, size = 0x4, offset = 0x4, fixed_abs, tag = 'smem constant byte address 0x4 - core index']
  #allocation1 [shape = 'u32[144,128]{1,0:T(1,128)}', space=vmem, size = 0x12000, scoped, tag = 'internal scratch']
  #allocation2 [shape = 'f32[1,1]{1,0:T(1,128)S(6)}', space=smem, size = 0x200, scoped, tag = 'scoped memory for sncrec_reweight_pallas.1']
  %s0 = inlined_call_operand.<no memory space> [shape: f32[1,1], index: 0, kind: input, shape index: {}]
  %s1 = inlined_call_operand.vmem [shape: f32[1,4], index: 1, kind: input, shape index: {}]
  %s2 = inlined_call_operand.vmem [shape: f32[2,4096], index: 2, kind: input, shape index: {}]
  %s3 = inlined_call_operand.vmem [shape: f32[2,4096], index: 3, kind: input, shape index: {}]
  %s4 = inlined_call_operand.vmem [shape: f32[2,4096], index: 4, kind: input, shape index: {}, may-alias: {4,7}]
  %s5 = inlined_call_operand.vmem [shape: f32[8,4096], index: 5, kind: input, shape index: {}]
  %s6 = inlined_call_operand.vmem [shape: f32[8,4096], index: 6, kind: input, shape index: {}, may-alias: {6,8}]
  %s7 = inlined_call_operand.vmem [shape: f32[2,4096], index: 7, kind: output, shape index: {0}, may-alias: {4,7}]
  %s8 = inlined_call_operand.vmem [shape: f32[8,4096], index: 8, kind: output, shape index: {1}, may-alias: {6,8}]
  %s9 = inlined_call_operand.vmem [shape: f32[8,4096], index: 9, kind: output, shape index: {2}]
  %10 = xla_tuple %s7, %s8, %s9
  %s11 = sld [smem:[#allocation0]]
  $region81: #{sncrec_reweight_pallas.1} parent=0
    _
  %s13 = ssub.s32 1, %s11
  %s14 = scalar_select 0, %s13, %s11
  %15 = sst [smem:[#allocation2]] %s0
  $region1: #{sncrec_reweight_pallas.1} parent=0
    #allocation3 [shape = 'u8[512]{0}', space=smem, size = 0x200, scoped, tag = 'input window, operand 1, single buffered']
    #allocation4 [shape = 's32[2]{0}', space=sflag, size = 0x8, scoped, tag = 'scoped memory for sncrec_reweight_pallas.1']
    %16 = vsyncpa [#allocation4], 0
    loop: start=0, step=1, limit=4
    $region2: #{sncrec_reweight_pallas.1} parent=1 // loop_pre_header
      _
    $region3: #{sncrec_reweight_pallas.1} parent=1 // loop_header
      %s18 = sphi 0, %s22
      %p19 = scmp.ge.s32.totalorder %s18, 4
      %s26 = sphi 0, %s26
      %s28 = sphi 0, %s26
      %s29 = sphi 0, %s28
      %s43 = sphi 0, %s29
      %s47 = sphi 0, %s47
      %s49 = sphi 0, %s47
      %s50 = sphi 0, %s49
      %s64 = sphi 0, %s50
      %s70 = sphi 0, %s72
      %s73 = sphi 0, %s70
      %s74 = sphi 0, %s73
      %s90 = sphi 0, %s74
      %s96 = sphi 0, %s98
      %s99 = sphi 0, %s96
      %s100 = sphi 0, %s99
      %s116 = sphi 0, %s100
      %s122 = sphi 0, %s124
      %s125 = sphi 0, %s122
      %s126 = sphi 0, %s125
      %s142 = sphi 0, %s126
      %s148 = sphi 0, %s150
      %s151 = sphi 0, %s148
      %s152 = sphi 0, %s151
      %s168 = sphi 0, %s152
      %s174 = sphi 0, %s176
      %s177 = sphi 0, %s174
      %s178 = sphi 0, %s177
      %s194 = sphi 0, %s178
      %s200 = sphi 0, %s202
      %s203 = sphi 0, %s200
      %s204 = sphi 0, %s203
      %s220 = sphi 0, %s204
      %s226 = sphi 0, %s228
      %s229 = sphi 0, %s226
      %s230 = sphi 0, %s229
      %s246 = sphi 0, %s230
      %s252 = sphi 0, %s254
      %s255 = sphi 0, %s252
      %s256 = sphi 0, %s255
      %s272 = sphi 0, %s256
    $region4: #{sncrec_reweight_pallas.1} parent=1 // loop_header_branch
      %21 = sbr.rel (%p19) target = $region8
    $region5: #{sncrec_reweight_pallas.1} parent=1 // loop_body
      %s23 = ssub.s32 %s18, 1
      %s24 = ssub.s32 %s18, 2
      %s25 = sadd.s32 %s18, 1
      %s27 = sadd.s32 %s26, 1
      %p30 = scmp.eq.s32.totalorder %s18, 1
      %p31 = scmp.ne.s32.totalorder %s26, %s28
      %p32 = scmp.eq.s32.totalorder %s18, 0
      %p33 = por %p31, %p32
      %p34 = scmp.ne.s32.totalorder %s26, %s28
      %p35 = scmp.eq.s32.totalorder %s23, 1
      %p36 = por %p34, %p35
      %p37 = scmp.ne.s32.totalorder %s28, %s29
      %p38 = scmp.eq.s32.totalorder %s23, 0
      %p39 = por %p37, %p38
      %p40 = scmp.ne.s32.totalorder %s28, %s29
      %p41 = scmp.eq.s32.totalorder %s24, 1
      %p42 = por %p40, %p41
      %p44 = scmp.ne.s32.totalorder %s29, %s43
      %p45 = scmp.eq.s32.totalorder %s24, 0
      %p46 = por %p44, %p45
      %s48 = sadd.s32 %s47, 1
      %p51 = scmp.eq.s32.totalorder %s18, 1
      %p52 = scmp.ne.s32.totalorder %s47, %s49
      %p53 = scmp.eq.s32.totalorder %s18, 0
      %p54 = por %p52, %p53
      %p55 = scmp.ne.s32.totalorder %s47, %s49
      %p56 = scmp.eq.s32.totalorder %s23, 1
      %p57 = por %p55, %p56
      %p58 = scmp.ne.s32.totalorder %s49, %s50
      %p59 = scmp.eq.s32.totalorder %s23, 0
      %p60 = por %p58, %p59
      %p61 = scmp.ne.s32.totalorder %s49, %s50
      %p62 = scmp.eq.s32.totalorder %s24, 1
      %p63 = por %p61, %p62
      %p65 = scmp.ne.s32.totalorder %s50, %s64
      %p66 = scmp.eq.s32.totalorder %s24, 0
      %p67 = por %p65, %p66
      %s68 = ssub.s32 %s18, %s25
      %p69 = scmp.eq.s32.totalorder %s68, 0
      %s71 = sadd.s32 %s70, 1
      %s72 = scalar_select %p69, %s70, %s71
      %p75 = pneg %p69
      %p76 = scmp.eq.s32.totalorder %s18, 1
      %p77 = por %p75, %p76
      %p78 = scmp.ne.s32.totalorder %s70, %s73
      %p79 = scmp.eq.s32.totalorder %s18, 0
      %p80 = por %p78, %p79
      %p81 = scmp.ne.s32.totalorder %s70, %s73
      %p82 = scmp.eq.s32.totalorder %s23, 1
      %p83 = por %p81, %p82
      %p84 = scmp.ne.s32.totalorder %s73, %s74
      %p85 = scmp.eq.s32.totalorder %s23, 0
      %p86 = por %p84, %p85
      %p87 = scmp.ne.s32.totalorder %s73, %s74
      %p88 = scmp.eq.s32.totalorder %s24, 1
      %p89 = por %p87, %p88
      %p91 = scmp.ne.s32.totalorder %s74, %s90
      %p92 = scmp.eq.s32.totalorder %s24, 0
      %p93 = por %p91, %p92
      %s94 = ssub.s32 %s18, %s25
      %p95 = scmp.eq.s32.totalorder %s94, 0
      %s97 = sadd.s32 %s96, 1
      %s98 = scalar_select %p95, %s96, %s97
      %p101 = pneg %p95
      %p102 = scmp.eq.s32.totalorder %s18, 1
      %p103 = por %p101, %p102
      %p104 = scmp.ne.s32.totalorder %s96, %s99
      %p105 = scmp.eq.s32.totalorder %s18, 0
      %p106 = por %p104, %p105
      %p107 = scmp.ne.s32.totalorder %s96, %s99
      %p108 = scmp.eq.s32.totalorder %s23, 1
      %p109 = por %p107, %p108
      %p110 = scmp.ne.s32.totalorder %s99, %s100
      %p111 = scmp.eq.s32.totalorder %s23, 0
      %p112 = por %p110, %p111
      %p113 = scmp.ne.s32.totalorder %s99, %s100
      %p114 = scmp.eq.s32.totalorder %s24, 1
      %p115 = por %p113, %p114
      %p117 = scmp.ne.s32.totalorder %s100, %s116
      %p118 = scmp.eq.s32.totalorder %s24, 0
      %p119 = por %p117, %p118
      %s120 = ssub.s32 %s18, %s25
      %p121 = scmp.eq.s32.totalorder %s120, 0
      %s123 = sadd.s32 %s122, 1
      %s124 = scalar_select %p121, %s122, %s123
      %p127 = pneg %p121
      %p128 = scmp.eq.s32.totalorder %s18, 1
      %p129 = por %p127, %p128
      %p130 = scmp.ne.s32.totalorder %s122, %s125
      %p131 = scmp.eq.s32.totalorder %s18, 0
      %p132 = por %p130, %p131
      %p133 = scmp.ne.s32.totalorder %s122, %s125
      %p134 = scmp.eq.s32.totalorder %s23, 1
      %p135 = por %p133, %p134
      %p136 = scmp.ne.s32.totalorder %s125, %s126
      %p137 = scmp.eq.s32.totalorder %s23, 0
      %p138 = por %p136, %p137
      %p139 = scmp.ne.s32.totalorder %s125, %s126
      %p140 = scmp.eq.s32.totalorder %s24, 1
      %p141 = por %p139, %p140
      %p143 = scmp.ne.s32.totalorder %s126, %s142
      %p144 = scmp.eq.s32.totalorder %s24, 0
      %p145 = por %p143, %p144
      %s146 = ssub.s32 %s18, %s25
      %p147 = scmp.eq.s32.totalorder %s146, 0
      %s149 = sadd.s32 %s148, 1
      %s150 = scalar_select %p147, %s148, %s149
      %p153 = pneg %p147
      %p154 = scmp.eq.s32.totalorder %s18, 1
      %p155 = por %p153, %p154
      %p156 = scmp.ne.s32.totalorder %s148, %s151
      %p157 = scmp.eq.s32.totalorder %s18, 0
      %p158 = por %p156, %p157
      %p159 = scmp.ne.s32.totalorder %s148, %s151
      %p160 = scmp.eq.s32.totalorder %s23, 1
      %p161 = por %p159, %p160
      %p162 = scmp.ne.s32.totalorder %s151, %s152
      %p163 = scmp.eq.s32.totalorder %s23, 0
      %p164 = por %p162, %p163
      %p165 = scmp.ne.s32.totalorder %s151, %s152
      %p166 = scmp.eq.s32.totalorder %s24, 1
      %p167 = por %p165, %p166
      %p169 = scmp.ne.s32.totalorder %s152, %s168
      %p170 = scmp.eq.s32.totalorder %s24, 0
      %p171 = por %p169, %p170
      %s172 = ssub.s32 %s18, %s25
      %p173 = scmp.eq.s32.totalorder %s172, 0
      %s175 = sadd.s32 %s174, 1
      %s176 = scalar_select %p173, %s174, %s175
      %p179 = pneg %p173
      %p180 = scmp.eq.s32.totalorder %s18, 1
      %p181 = por %p179, %p180
      %p182 = scmp.ne.s32.totalorder %s174, %s177
      %p183 = scmp.eq.s32.totalorder %s18, 0
      %p184 = por %p182, %p183
      %p185 = scmp.ne.s32.totalorder %s174, %s177
      %p186 = scmp.eq.s32.totalorder %s23, 1
      %p187 = por %p185, %p186
      %p188 = scmp.ne.s32.totalorder %s177, %s178
      %p189 = scmp.eq.s32.totalorder %s23, 0
      %p190 = por %p188, %p189
      %p191 = scmp.ne.s32.totalorder %s177, %s178
      %p192 = scmp.eq.s32.totalorder %s24, 1
      %p193 = por %p191, %p192
      %p195 = scmp.ne.s32.totalorder %s178, %s194
      %p196 = scmp.eq.s32.totalorder %s24, 0
      %p197 = por %p195, %p196
      %s198 = ssub.s32 %s18, %s25
      %p199 = scmp.eq.s32.totalorder %s198, 0
      %s201 = sadd.s32 %s200, 1
      %s202 = scalar_select %p199, %s200, %s201
      %p205 = pneg %p199
      %p206 = scmp.eq.s32.totalorder %s18, 1
      %p207 = por %p205, %p206
      %p208 = scmp.ne.s32.totalorder %s200, %s203
      %p209 = scmp.eq.s32.totalorder %s18, 0
      %p210 = por %p208, %p209
      %p211 = scmp.ne.s32.totalorder %s200, %s203
      %p212 = scmp.eq.s32.totalorder %s23, 1
      %p213 = por %p211, %p212
      %p214 = scmp.ne.s32.totalorder %s203, %s204
      %p215 = scmp.eq.s32.totalorder %s23, 0
      %p216 = por %p214, %p215
      %p217 = scmp.ne.s32.totalorder %s203, %s204
      %p218 = scmp.eq.s32.totalorder %s24, 1
      %p219 = por %p217, %p218
      %p221 = scmp.ne.s32.totalorder %s204, %s220
      %p222 = scmp.eq.s32.totalorder %s24, 0
      %p223 = por %p221, %p222
      %s224 = ssub.s32 %s18, %s25
      %p225 = scmp.eq.s32.totalorder %s224, 0
      %s227 = sadd.s32 %s226, 1
      %s228 = scalar_select %p225, %s226, %s227
      %p231 = pneg %p225
      %p232 = scmp.eq.s32.totalorder %s18, 1
      %p233 = por %p231, %p232
      %p234 = scmp.ne.s32.totalorder %s226, %s229
      %p235 = scmp.eq.s32.totalorder %s18, 0
      %p236 = por %p234, %p235
      %p237 = scmp.ne.s32.totalorder %s226, %s229
      %p238 = scmp.eq.s32.totalorder %s23, 1
      %p239 = por %p237, %p238
      %p240 = scmp.ne.s32.totalorder %s229, %s230
      %p241 = scmp.eq.s32.totalorder %s23, 0
      %p242 = por %p240, %p241
      %p243 = scmp.ne.s32.totalorder %s229, %s230
      %p244 = scmp.eq.s32.totalorder %s24, 1
      %p245 = por %p243, %p244
      %p247 = scmp.ne.s32.totalorder %s230, %s246
      %p248 = scmp.eq.s32.totalorder %s24, 0
      %p249 = por %p247, %p248
      %s250 = ssub.s32 %s18, %s25
      %p251 = scmp.eq.s32.totalorder %s250, 0
      %s253 = sadd.s32 %s252, 1
      %s254 = scalar_select %p251, %s252, %s253
      %p257 = pneg %p251
      %p258 = scmp.eq.s32.totalorder %s18, 1
      %p259 = por %p257, %p258
      %p260 = scmp.ne.s32.totalorder %s252, %s255
      %p261 = scmp.eq.s32.totalorder %s18, 0
      %p262 = por %p260, %p261
      %p263 = scmp.ne.s32.totalorder %s252, %s255
      %p264 = scmp.eq.s32.totalorder %s23, 1
      %p265 = por %p263, %p264
      %p266 = scmp.ne.s32.totalorder %s255, %s256
      %p267 = scmp.eq.s32.totalorder %s23, 0
      %p268 = por %p266, %p267
      %p269 = scmp.ne.s32.totalorder %s255, %s256
      %p270 = scmp.eq.s32.totalorder %s24, 1
      %p271 = por %p269, %p270
      %p273 = scmp.ne.s32.totalorder %s256, %s272
      %p274 = scmp.eq.s32.totalorder %s24, 0
      %p275 = por %p273, %p274
      %p276 = scmp.le.s32.totalorder 1, %s18
      %p277 = scmp.lt.s32.totalorder %s18, 3
      %p278 = pnand %p276, %p277
      %p279 = pneg %p278
      // Predicated region
      $region9: #{sncrec_reweight_pallas.1} parent=5 // pred_check
        _
      $region10: #{sncrec_reweight_pallas.1} parent=5 // pred_check_branch
        %281 = sbr.rel (%p278) target = $region12
      $region11: #{sncrec_reweight_pallas.1} parent=5 // pred_region
        %s282 = ssub.s32 %s18, 1
        // Predicated region
        $region13: #{sncrec_reweight_pallas.1} parent=11 // pred_check
          %p283 = pneg %p39
        $region14: #{sncrec_reweight_pallas.1} parent=11 // pred_check_branch
          %285 = sbr.rel (%p283) target = $region16
        $region15: #{sncrec_reweight_pallas.1} parent=11 // pred_region
          _
        $region16: #{sncrec_reweight_pallas.1} parent=11 // pred_fallthru
          _
        // Predicated region
        $region17: #{sncrec_reweight_pallas.1} parent=11 // pred_check
          %p286 = pneg %p60
        $region18: #{sncrec_reweight_pallas.1} parent=11 // pred_check_branch
          %288 = sbr.rel (%p286) target = $region20
        $region19: #{sncrec_reweight_pallas.1} parent=11 // pred_region
          %s290 = ssub.s32 16, 16
          %291 = vsyncadd [#allocation4], %s290
          %s293 = sshll.u32 %s1, 4
          %s294 = int_to_ptr.vmem [resolvable:$true] %s293
          %296 = dma.vmem_to_smem %s294, 16, [#allocation3], [#allocation4]
        $region20: #{sncrec_reweight_pallas.1} parent=11 // pred_fallthru
          _
      $region12: #{sncrec_reweight_pallas.1} parent=5 // pred_fallthru
        _
      %p297 = scmp.lt.s32.totalorder %s18, 2
      // Predicated region
      $region21: #{sncrec_reweight_pallas.1} parent=5 // pred_check
        %p298 = pneg %p297
      $region22: #{sncrec_reweight_pallas.1} parent=5 // pred_check_branch
        %300 = sbr.rel (%p298) target = $region24
      $region23: #{sncrec_reweight_pallas.1} parent=5 // pred_region
        // Predicated region
        $region25: #{sncrec_reweight_pallas.1} parent=23 // pred_check
          %p301 = pneg %p80
        $region26: #{sncrec_reweight_pallas.1} parent=23 // pred_check_branch
          %303 = sbr.rel (%p301) target = $region28
        $region27: #{sncrec_reweight_pallas.1} parent=23 // pred_region
          %s304 = smul.u32 16, %s18
          %p305 = scmp.lt.s32.totalorder %s304, 31
          %s306 = scalar_select %p305, %s304, 31
          %s307 = smul.addr %s306, 2
          %s308 = scalar_lea.vmem %s2, %s307
          %s309 = smul.u32 16, %s18
        $region28: #{sncrec_reweight_pallas.1} parent=23 // pred_fallthru
          _
        // Predicated region
        $region29: #{sncrec_reweight_pallas.1} parent=23 // pred_check
          %p310 = pneg %p106
        $region30: #{sncrec_reweight_pallas.1} parent=23 // pred_check_branch
          %312 = sbr.rel (%p310) target = $region32
        $region31: #{sncrec_reweight_pallas.1} parent=23 // pred_region
          %s313 = smul.u32 16, %s18
          %p314 = scmp.lt.s32.totalorder %s313, 31
          %s315 = scalar_select %p314, %s313, 31
          %s316 = smul.addr %s315, 2
          %s317 = scalar_lea.vmem %s3, %s316
          %s318 = smul.u32 16, %s18
        $region32: #{sncrec_reweight_pallas.1} parent=23 // pred_fallthru
          _
        // Predicated region
        $region33: #{sncrec_reweight_pallas.1} parent=23 // pred_check
          %p319 = pneg %p132
        $region34: #{sncrec_reweight_pallas.1} parent=23 // pred_check_branch
          %321 = sbr.rel (%p319) target = $region36
        $region35: #{sncrec_reweight_pallas.1} parent=23 // pred_region
          %s322 = smul.u32 16, %s18
          %p323 = scmp.lt.s32.totalorder %s322, 31
          %s324 = scalar_select %p323, %s322, 31
          %s325 = smul.addr %s324, 2
          %s326 = scalar_lea.vmem %s4, %s325
          %s327 = smul.u32 16, %s18
        $region36: #{sncrec_reweight_pallas.1} parent=23 // pred_fallthru
          _
        // Predicated region
        $region37: #{sncrec_reweight_pallas.1} parent=23 // pred_check
          %p328 = pneg %p158
        $region38: #{sncrec_reweight_pallas.1} parent=23 // pred_check_branch
          %330 = sbr.rel (%p328) target = $region40
        $region39: #{sncrec_reweight_pallas.1} parent=23 // pred_region
          %s331 = smul.u32 16, %s18
          %p332 = scmp.lt.s32.totalorder %s331, 31
          %s333 = scalar_select %p332, %s331, 31
          %s334 = smul.addr %s333, 8
          %s335 = scalar_lea.vmem %s5, %s334
          %s336 = smul.u32 16, %s18
        $region40: #{sncrec_reweight_pallas.1} parent=23 // pred_fallthru
          _
        // Predicated region
        $region41: #{sncrec_reweight_pallas.1} parent=23 // pred_check
          %p337 = pneg %p184
        $region42: #{sncrec_reweight_pallas.1} parent=23 // pred_check_branch
          %339 = sbr.rel (%p337) target = $region44
        $region43: #{sncrec_reweight_pallas.1} parent=23 // pred_region
          %s340 = smul.u32 16, %s18
          %p341 = scmp.lt.s32.totalorder %s340, 31
          %s342 = scalar_select %p341, %s340, 31
          %s343 = smul.addr %s342, 8
          %s344 = scalar_lea.vmem %s6, %s343
          %s345 = smul.u32 16, %s18
        $region44: #{sncrec_reweight_pallas.1} parent=23 // pred_fallthru
          _
      $region24: #{sncrec_reweight_pallas.1} parent=5 // pred_fallthru
        _
      %p346 = scmp.le.s32.totalorder 1, %s18
      %p347 = scmp.lt.s32.totalorder %s18, 3
      %p348 = pnand %p346, %p347
      %p349 = pneg %p348
      // Predicated region
      $region45: #{sncrec_reweight_pallas.1} parent=5 // pred_check
        _
      $region46: #{sncrec_reweight_pallas.1} parent=5 // pred_check_branch
        %351 = sbr.rel (%p348) target = $region48
      $region47: #{sncrec_reweight_pallas.1} parent=5 // pred_region
        %s352 = ssub.s32 %s18, 1
        // Predicated region
        $region49: #{sncrec_reweight_pallas.1} parent=47 // pred_check
          %p353 = pneg %p60
        $region50: #{sncrec_reweight_pallas.1} parent=47 // pred_check_branch
          %355 = sbr.rel (%p353) target = $region52
        $region51: #{sncrec_reweight_pallas.1} parent=47 // pred_region
          %356 = dma.done [#allocation4], 16
        $region52: #{sncrec_reweight_pallas.1} parent=47 // pred_fallthru
          _
        %357 = sfence
        %p358 = pneg %p39
        %p359 = pneg %p36
        %p360 = pneg %p60
        %p361 = pneg %p57
        %s362 = smul.u32 16, %s23
        %p363 = scmp.lt.s32.totalorder %s362, 31
        %s364 = scalar_select %p363, %s362, 31
        %s365 = smul.addr %s364, 2
        %s366 = scalar_lea.vmem %s2, %s365
        %p367 = pneg %p86
        %p368 = pneg %p83
        %s369 = smul.u32 16, %s23
        %p370 = scmp.lt.s32.totalorder %s369, 31
        %s371 = scalar_select %p370, %s369, 31
        %s372 = smul.addr %s371, 2
        %s373 = scalar_lea.vmem %s3, %s372
        %p374 = pneg %p112
        %p375 = pneg %p109
        %s376 = smul.u32 16, %s23
        %p377 = scmp.lt.s32.totalorder %s376, 31
        %s378 = scalar_select %p377, %s376, 31
        %s379 = smul.addr %s378, 2
        %s380 = scalar_lea.vmem %s4, %s379
        %p381 = pneg %p138
        %p382 = pneg %p135
        %s383 = smul.u32 16, %s23
        %p384 = scmp.lt.s32.totalorder %s383, 31
        %s385 = scalar_select %p384, %s383, 31
        %s386 = smul.addr %s385, 8
        %s387 = scalar_lea.vmem %s5, %s386
        %p388 = pneg %p164
        %p389 = pneg %p161
        %s390 = smul.u32 16, %s23
        %p391 = scmp.lt.s32.totalorder %s390, 31
        %s392 = scalar_select %p391, %s390, 31
        %s393 = smul.addr %s392, 8
        %s394 = scalar_lea.vmem %s6, %s393
        %p395 = pneg %p190
        %p396 = pneg %p187
        %p397 = pneg %p216
        %p398 = pneg %p213
        %s399 = smul.u32 16, %s23
        %p400 = scmp.lt.s32.totalorder %s399, 31
        %s401 = scalar_select %p400, %s399, 31
        %s402 = smul.addr %s401, 2
        %s403 = scalar_lea.vmem %s7, %s402
        %p404 = pneg %p242
        %p405 = pneg %p239
        %s406 = smul.u32 16, %s23
        %p407 = scmp.lt.s32.totalorder %s406, 31
        %s408 = scalar_select %p407, %s406, 31
        %s409 = smul.addr %s408, 8
        %s410 = scalar_lea.vmem %s8, %s409
        %p411 = pneg %p268
        %p412 = pneg %p265
        %s413 = smul.u32 16, %s23
        %p414 = scmp.lt.s32.totalorder %s413, 31
        %s415 = scalar_select %p414, %s413, 31
        %s416 = smul.addr %s415, 8
        %s417 = scalar_lea.vmem %s9, %s416
        %s418 = smul.u32 16, %s23
        %p419 = scmp.lt.s32.totalorder %s418, 31
        %s420 = scalar_select %p419, %s418, 31
        %s421 = smul.addr %s420, 2
        %s422 = scalar_lea.vmem %s2, %s421
        %s423 = smul.u32 16, %s23
        %s424 = smul.u32 16, %s23
        %p425 = scmp.lt.s32.totalorder %s424, 31
        %s426 = scalar_select %p425, %s424, 31
        %s427 = smul.addr %s426, 2
        %s428 = scalar_lea.vmem %s3, %s427
        %s429 = smul.u32 16, %s23
        %s430 = smul.u32 16, %s23
        %p431 = scmp.lt.s32.totalorder %s430, 31
        %s432 = scalar_select %p431, %s430, 31
        %s433 = smul.addr %s432, 2
        %s434 = scalar_lea.vmem %s4, %s433
        %s435 = smul.u32 16, %s23
        %s436 = smul.u32 16, %s23
        %p437 = scmp.lt.s32.totalorder %s436, 31
        %s438 = scalar_select %p437, %s436, 31
        %s439 = smul.addr %s438, 8
        %s440 = scalar_lea.vmem %s5, %s439
        %s441 = smul.u32 16, %s23
        %s442 = smul.u32 16, %s23
        %p443 = scmp.lt.s32.totalorder %s442, 31
        %s444 = scalar_select %p443, %s442, 31
        %s445 = smul.addr %s444, 8
        %s446 = scalar_lea.vmem %s6, %s445
        %s447 = smul.u32 16, %s23
        %s448 = smul.u32 16, %s23
        %p449 = scmp.lt.s32.totalorder %s448, 31
        %s450 = scalar_select %p449, %s448, 31
        %s451 = smul.addr %s450, 2
        %s452 = scalar_lea.vmem %s7, %s451
        %s453 = smul.u32 16, %s23
        %s454 = smul.u32 16, %s23
        %p455 = scmp.lt.s32.totalorder %s454, 31
        %s456 = scalar_select %p455, %s454, 31
        %s457 = smul.addr %s456, 8
        %s458 = scalar_lea.vmem %s8, %s457
        %s459 = smul.u32 16, %s23
        %s460 = smul.u32 16, %s23
        %p461 = scmp.lt.s32.totalorder %s460, 31
        %s462 = scalar_select %p461, %s460, 31
        %s463 = smul.addr %s462, 8
        %s464 = scalar_lea.vmem %s9, %s463
        %s465 = smul.u32 16, %s23
        %s466 = sld [smem:[#allocation2]]
        %v467 = vld [vmem:[%s428] sm:$0xff]
        %v468 = vld [vmem:[%s428 + $0x8] sm:$0xff]
        %v469 = vld [vmem:[%s428 + $0x10] sm:$0xff]
        %v470 = vld [vmem:[%s428 + $0x18] sm:$0xff]
        %v471 = vld [vmem:[%s422] sm:$0xff]
        %v472 = vld [vmem:[%s422 + $0x8] sm:$0xff]
        %v473 = vld [vmem:[%s422 + $0x10] sm:$0xff]
        %v474 = vld [vmem:[%s422 + $0x18] sm:$0xff]
        %v475 = vadd.f32 %v471, 1e-20
        %v476 = vadd.f32 %v472, 1e-20
        %v477 = vadd.f32 %v473, 1e-20
        %v478 = vadd.f32 %v474, 1e-20
        %v479 = vrcp.pop %v475
        %v480 = vrcp.pop %v476
        %v481 = vrcp.pop %v477
        %v482 = vrcp.pop %v478
        %v483 = vmul.f32 %v467, %v479
        %v484 = vmul.f32 %v468, %v480
        %v485 = vmul.f32 %v469, %v481
        %v486 = vmul.f32 %v470, %v482
        %v487 = vmin.f32 %v483, 1.0
        %v488 = vmin.f32 %v484, 1.0
        %v489 = vmin.f32 %v485, 1.0
        %v490 = vmin.f32 %v486, 1.0
        %vm491 = vcmp.gt.f32.partialorder %v487, 0.0
        %vm492 = vcmp.gt.f32.partialorder %v488, 0.0
        %vm493 = vcmp.gt.f32.partialorder %v489, 0.0
        %vm494 = vcmp.gt.f32.partialorder %v490, 0.0
        %v495 = vlog2.pop %v487
        %v496 = vmul.f32 %v495, 0.6931472
        %v497 = vlog2.pop %v488
        %v498 = vmul.f32 %v497, 0.6931472
        %v499 = vlog2.pop %v489
        %v500 = vmul.f32 %v499, 0.6931472
        %v501 = vlog2.pop %v490
        %v502 = vmul.f32 %v501, 0.6931472
        %v503 = vstv %s466
        %v504 = vmul.f32 %v503, %v496
        %v505 = vmul.f32 %v503, %v498
        %v506 = vmul.f32 %v503, %v500
        %v507 = vmul.f32 %v503, %v502
        %v508 = vmul.f32 %v504, 1.442695
        %v509 = vpow.pop %v508
        %v510 = vmul.f32 %v505, 1.442695
        %v511 = vpow.pop %v510
        %v512 = vmul.f32 %v506, 1.442695
        %v513 = vpow.pop %v512
        %v514 = vmul.f32 %v507, 1.442695
        %v515 = vpow.pop %v514
        %v516 = vsel %vm491, %v509, 0.0
        %v517 = vsel %vm492, %v511, 0.0
        %v518 = vsel %vm493, %v513, 0.0
        %v519 = vsel %vm494, %v515, 0.0
        %v520 = vld [vmem:[%s434] sm:$0xff]
        %v521 = vld [vmem:[%s434 + $0x8] sm:$0xff]
        %v522 = vld [vmem:[%s434 + $0x10] sm:$0xff]
        %v523 = vld [vmem:[%s434 + $0x18] sm:$0xff]
        %v524 = vmul.f32 %v520, %v516
        %v525 = vmul.f32 %v521, %v517
        %v526 = vmul.f32 %v522, %v518
        %v527 = vmul.f32 %v523, %v519
        %528 = vst [vmem:[%s452] sm:$0xff] %v524
        %529 = vst [vmem:[%s452 + $0x8] sm:$0xff] %v525
        %530 = vst [vmem:[%s452 + $0x10] sm:$0xff] %v526
        %531 = vst [vmem:[%s452 + $0x18] sm:$0xff] %v527
        %v532 = vlaneseq
        %v533 = vshrl.u32 %v532, 7
        %vm534 = vcmp.lt.s32.totalorder %v533, 0
        %v535 = vsub.s32 0, %v533
        %v536 = vsel %vm534, %v535, %v533
        %v537 = vshrl.u32 %v536, 2
        %v538 = vand.u32 %v536, 3
        %v539 = vsub.s32 0, %v538
        %v540 = vsel %vm534, %v539, %v538
        %vm541 = vcmp.ne.s32.totalorder %v540, 0
        %vm542 = vcmp.lt.s32.totalorder %v540, 0
        %vm543 = vmand %vm542, %vm541
        %v544 = vadd.s32 %v540, 4
        %v545 = vsel %vm543, %v544, %v540
        %s546 = sld [smem:[#allocation3]]
        %v547 = vstv %s546
        %vm548 = vcmp.eq.s32.totalorder %v545, 1
        %s549 = sld [smem:[#allocation3 + $0x1]]
        %v550 = vstv %s549
        %v551 = vsel %vm548, %v550, %v547
        %vm552 = vcmp.eq.s32.totalorder %v545, 2
        %s553 = sld [smem:[#allocation3 + $0x2]]
        %v554 = vstv %s553
        %v555 = vsel %vm552, %v554, %v551
        %vm556 = vcmp.eq.s32.totalorder %v545, 3
        %s557 = sld [smem:[#allocation3 + $0x3]]
        %v558 = vstv %s557
        %v559 = vsel %vm556, %v558, %v555
        %v560 = vld [vmem:[%s446] sm:$0xff]
        %v561 = vld [vmem:[%s446 + $0x8] sm:$0xff]
        %v562 = vld [vmem:[%s446 + $0x10] sm:$0xff]
        %v563 = vld [vmem:[%s446 + $0x18] sm:$0xff]
        %v564 = vld [vmem:[%s446 + $0x20] sm:$0xff]
        %v565 = vld [vmem:[%s446 + $0x28] sm:$0xff]
        %v566 = vld [vmem:[%s446 + $0x30] sm:$0xff]
        %v567 = vld [vmem:[%s446 + $0x38] sm:$0xff]
        %v568 = vld [vmem:[%s446 + $0x40] sm:$0xff]
        %v569 = vld [vmem:[%s446 + $0x48] sm:$0xff]
        %v570 = vld [vmem:[%s446 + $0x50] sm:$0xff]
        %v571 = vld [vmem:[%s446 + $0x58] sm:$0xff]
        %v572 = vld [vmem:[%s446 + $0x60] sm:$0xff]
        %v573 = vld [vmem:[%s446 + $0x68] sm:$0xff]
        %v574 = vld [vmem:[%s446 + $0x70] sm:$0xff]
        %v575 = vld [vmem:[%s446 + $0x78] sm:$0xff]
        %vm576 = vcmp.gt.f32.partialorder %v560, 0.0
        %vm577 = vcmp.gt.f32.partialorder %v561, 0.0
        %vm578 = vcmp.gt.f32.partialorder %v562, 0.0
        %vm579 = vcmp.gt.f32.partialorder %v563, 0.0
        %vm580 = vcmp.gt.f32.partialorder %v564, 0.0
        %vm581 = vcmp.gt.f32.partialorder %v565, 0.0
        %vm582 = vcmp.gt.f32.partialorder %v566, 0.0
        %vm583 = vcmp.gt.f32.partialorder %v567, 0.0
        %vm584 = vcmp.gt.f32.partialorder %v568, 0.0
        %vm585 = vcmp.gt.f32.partialorder %v569, 0.0
        %vm586 = vcmp.gt.f32.partialorder %v570, 0.0
        %vm587 = vcmp.gt.f32.partialorder %v571, 0.0
        %vm588 = vcmp.gt.f32.partialorder %v572, 0.0
        %vm589 = vcmp.gt.f32.partialorder %v573, 0.0
        %vm590 = vcmp.gt.f32.partialorder %v574, 0.0
        %vm591 = vcmp.gt.f32.partialorder %v575, 0.0
        %v592 = vlog2.pop %v560
        %v593 = vmul.f32 %v592, 0.6931472
        %v594 = vlog2.pop %v561
        %v595 = vmul.f32 %v594, 0.6931472
        %v596 = vlog2.pop %v562
        %v597 = vmul.f32 %v596, 0.6931472
        %v598 = vlog2.pop %v563
        %v599 = vmul.f32 %v598, 0.6931472
        %v600 = vlog2.pop %v564
        %v601 = vmul.f32 %v600, 0.6931472
        %v602 = vlog2.pop %v565
        %v603 = vmul.f32 %v602, 0.6931472
        %v604 = vlog2.pop %v566
        %v605 = vmul.f32 %v604, 0.6931472
        %v606 = vlog2.pop %v567
        %v607 = vmul.f32 %v606, 0.6931472
        %v608 = vlog2.pop %v568
        %v609 = vmul.f32 %v608, 0.6931472
        %v610 = vlog2.pop %v569
        %v611 = vmul.f32 %v610, 0.6931472
        %v612 = vlog2.pop %v570
        %v613 = vmul.f32 %v612, 0.6931472
        %v614 = vlog2.pop %v571
        %v615 = vmul.f32 %v614, 0.6931472
        %v616 = vlog2.pop %v572
        %v617 = vmul.f32 %v616, 0.6931472
        %v618 = vlog2.pop %v573
        %v619 = vmul.f32 %v618, 0.6931472
        %v620 = vlog2.pop %v574
        %v621 = vmul.f32 %v620, 0.6931472
        %v622 = vlog2.pop %v575
        %v623 = vmul.f32 %v622, 0.6931472
        %v624 = vmul.f32 %v559, %v593
        %v625 = vmul.f32 %v559, %v595
        %v626 = vmul.f32 %v559, %v597
        %v627 = vmul.f32 %v559, %v599
        %v628 = vmul.f32 %v559, %v601
        %v629 = vmul.f32 %v559, %v603
        %v630 = vmul.f32 %v559, %v605
        %v631 = vmul.f32 %v559, %v607
        %v632 = vmul.f32 %v559, %v609
        %v633 = vmul.f32 %v559, %v611
        %v634 = vmul.f32 %v559, %v613
        %v635 = vmul.f32 %v559, %v615
        %v636 = vmul.f32 %v559, %v617
        %v637 = vmul.f32 %v559, %v619
        %v638 = vmul.f32 %v559, %v621
        %v639 = vmul.f32 %v559, %v623
        %v640 = vmul.f32 %v624, 1.442695
        %v641 = vpow.pop %v640
        %v642 = vmul.f32 %v625, 1.442695
        %v643 = vpow.pop %v642
        %v644 = vmul.f32 %v626, 1.442695
        %v645 = vpow.pop %v644
        %v646 = vmul.f32 %v627, 1.442695
        %v647 = vpow.pop %v646
        %v648 = vmul.f32 %v628, 1.442695
        %v649 = vpow.pop %v648
        %v650 = vmul.f32 %v629, 1.442695
        %v651 = vpow.pop %v650
        %v652 = vmul.f32 %v630, 1.442695
        %v653 = vpow.pop %v652
        %v654 = vmul.f32 %v631, 1.442695
        %v655 = vpow.pop %v654
        %v656 = vmul.f32 %v632, 1.442695
        %v657 = vpow.pop %v656
        %v658 = vmul.f32 %v633, 1.442695
        %v659 = vpow.pop %v658
        %v660 = vmul.f32 %v634, 1.442695
        %v661 = vpow.pop %v660
        %v662 = vmul.f32 %v635, 1.442695
        %v663 = vpow.pop %v662
        %v664 = vmul.f32 %v636, 1.442695
        %v665 = vpow.pop %v664
        %v666 = vmul.f32 %v637, 1.442695
        %v667 = vpow.pop %v666
        %v668 = vmul.f32 %v638, 1.442695
        %v669 = vpow.pop %v668
        %v670 = vmul.f32 %v639, 1.442695
        %v671 = vpow.pop %v670
        %v672 = vsel %vm576, %v641, 0.0
        %v673 = vsel %vm577, %v643, 0.0
        %v674 = vsel %vm578, %v645, 0.0
        %v675 = vsel %vm579, %v647, 0.0
        %v676 = vsel %vm580, %v649, 0.0
        %v677 = vsel %vm581, %v651, 0.0
        %v678 = vsel %vm582, %v653, 0.0
        %v679 = vsel %vm583, %v655, 0.0
        %v680 = vsel %vm584, %v657, 0.0
        %v681 = vsel %vm585, %v659, 0.0
        %v682 = vsel %vm586, %v661, 0.0
        %v683 = vsel %vm587, %v663, 0.0
        %v684 = vsel %vm588, %v665, 0.0
        %v685 = vsel %vm589, %v667, 0.0
        %v686 = vsel %vm590, %v669, 0.0
        %v687 = vsel %vm591, %v671, 0.0
        %688 = vst [vmem:[%s458] sm:$0xff] %v672
        %689 = vst [vmem:[%s458 + $0x8] sm:$0xff] %v673
        %690 = vst [vmem:[%s458 + $0x10] sm:$0xff] %v674
        %691 = vst [vmem:[%s458 + $0x18] sm:$0xff] %v675
        %692 = vst [vmem:[%s458 + $0x20] sm:$0xff] %v676
        %693 = vst [vmem:[%s458 + $0x28] sm:$0xff] %v677
        %694 = vst [vmem:[%s458 + $0x30] sm:$0xff] %v678
        %695 = vst [vmem:[%s458 + $0x38] sm:$0xff] %v679
        %696 = vst [vmem:[%s458 + $0x40] sm:$0xff] %v680
        %697 = vst [vmem:[%s458 + $0x48] sm:$0xff] %v681
        %698 = vst [vmem:[%s458 + $0x50] sm:$0xff] %v682
        %699 = vst [vmem:[%s458 + $0x58] sm:$0xff] %v683
        %700 = vst [vmem:[%s458 + $0x60] sm:$0xff] %v684
        %701 = vst [vmem:[%s458 + $0x68] sm:$0xff] %v685
        %702 = vst [vmem:[%s458 + $0x70] sm:$0xff] %v686
        %703 = vst [vmem:[%s458 + $0x78] sm:$0xff] %v687
        %v704 = vld [vmem:[%s440] sm:$0xff]
        %v705 = vld [vmem:[%s440 + $0x8] sm:$0xff]
        %v706 = vld [vmem:[%s440 + $0x10] sm:$0xff]
        %v707 = vld [vmem:[%s440 + $0x18] sm:$0xff]
        %v708 = vld [vmem:[%s440 + $0x20] sm:$0xff]
        %v709 = vld [vmem:[%s440 + $0x28] sm:$0xff]
        %v710 = vld [vmem:[%s440 + $0x30] sm:$0xff]
        %v711 = vld [vmem:[%s440 + $0x38] sm:$0xff]
        %v712 = vld [vmem:[%s440 + $0x40] sm:$0xff]
        %v713 = vld [vmem:[%s440 + $0x48] sm:$0xff]
        %v714 = vld [vmem:[%s440 + $0x50] sm:$0xff]
        %v715 = vld [vmem:[%s440 + $0x58] sm:$0xff]
        %v716 = vld [vmem:[%s440 + $0x60] sm:$0xff]
        %v717 = vld [vmem:[%s440 + $0x68] sm:$0xff]
        %v718 = vld [vmem:[%s440 + $0x70] sm:$0xff]
        %v719 = vld [vmem:[%s440 + $0x78] sm:$0xff]
        %v720 = vmul.f32 %v704, %v672
        %v721 = vmul.f32 %v705, %v673
        %v722 = vmul.f32 %v706, %v674
        %v723 = vmul.f32 %v707, %v675
        %v724 = vmul.f32 %v708, %v676
        %v725 = vmul.f32 %v709, %v677
        %v726 = vmul.f32 %v710, %v678
        %v727 = vmul.f32 %v711, %v679
        %v728 = vmul.f32 %v712, %v680
        %v729 = vmul.f32 %v713, %v681
        %v730 = vmul.f32 %v714, %v682
        %v731 = vmul.f32 %v715, %v683
        %v732 = vmul.f32 %v716, %v684
        %v733 = vmul.f32 %v717, %v685
        %v734 = vmul.f32 %v718, %v686
        %v735 = vmul.f32 %v719, %v687
        %736 = vst [vmem:[%s464] sm:$0xff] %v720
        %737 = vst [vmem:[%s464 + $0x8] sm:$0xff] %v721
        %738 = vst [vmem:[%s464 + $0x10] sm:$0xff] %v722
        %739 = vst [vmem:[%s464 + $0x18] sm:$0xff] %v723
        %740 = vst [vmem:[%s464 + $0x20] sm:$0xff] %v724
        %741 = vst [vmem:[%s464 + $0x28] sm:$0xff] %v725
        %742 = vst [vmem:[%s464 + $0x30] sm:$0xff] %v726
        %743 = vst [vmem:[%s464 + $0x38] sm:$0xff] %v727
        %744 = vst [vmem:[%s464 + $0x40] sm:$0xff] %v728
        %745 = vst [vmem:[%s464 + $0x48] sm:$0xff] %v729
        %746 = vst [vmem:[%s464 + $0x50] sm:$0xff] %v730
        %747 = vst [vmem:[%s464 + $0x58] sm:$0xff] %v731
        %748 = vst [vmem:[%s464 + $0x60] sm:$0xff] %v732
        %749 = vst [vmem:[%s464 + $0x68] sm:$0xff] %v733
        %750 = vst [vmem:[%s464 + $0x70] sm:$0xff] %v734
        %751 = vst [vmem:[%s464 + $0x78] sm:$0xff] %v735
        %s752 = smul.u32 16, %s23
        %p753 = scmp.lt.s32.totalorder %s752, 31
        %s754 = scalar_select %p753, %s752, 31
        %s755 = smul.addr %s754, 2
        %s756 = scalar_lea.vmem %s7, %s755
        %s757 = smul.u32 16, %s23
        %p758 = scmp.lt.s32.totalorder %s757, 31
        %s759 = scalar_select %p758, %s757, 31
        %s760 = smul.addr %s759, 8
        %s761 = scalar_lea.vmem %s8, %s760
        %s762 = smul.u32 16, %s23
        %p763 = scmp.lt.s32.totalorder %s762, 31
        %s764 = scalar_select %p763, %s762, 31
        %s765 = smul.addr %s764, 8
        %s766 = scalar_lea.vmem %s9, %s765
        // Predicated region
        $region53: #{sncrec_reweight_pallas.1} parent=47 // pred_check
          %p767 = pneg %p213
        $region54: #{sncrec_reweight_pallas.1} parent=47 // pred_check_branch
          %769 = sbr.rel (%p767) target = $region56
        $region55: #{sncrec_reweight_pallas.1} parent=47 // pred_region
          %s770 = smul.u32 16, %s23
        $region56: #{sncrec_reweight_pallas.1} parent=47 // pred_fallthru
          _
        // Predicated region
        $region57: #{sncrec_reweight_pallas.1} parent=47 // pred_check
          %p771 = pneg %p239
        $region58: #{sncrec_reweight_pallas.1} parent=47 // pred_check_branch
          %773 = sbr.rel (%p771) target = $region60
        $region59: #{sncrec_reweight_pallas.1} parent=47 // pred_region
          %s774 = smul.u32 16, %s23
        $region60: #{sncrec_reweight_pallas.1} parent=47 // pred_fallthru
          _
        // Predicated region
        $region61: #{sncrec_reweight_pallas.1} parent=47 // pred_check
          %p775 = pneg %p265
        $region62: #{sncrec_reweight_pallas.1} parent=47 // pred_check_branch
          %777 = sbr.rel (%p775) target = $region64
        $region63: #{sncrec_reweight_pallas.1} parent=47 // pred_region
          %s778 = smul.u32 16, %s23
        $region64: #{sncrec_reweight_pallas.1} parent=47 // pred_fallthru
          _
      $region48: #{sncrec_reweight_pallas.1} parent=5 // pred_fallthru
        _
      %p779 = scmp.le.s32.totalorder 2, %s18
      // Predicated region
      $region65: #{sncrec_reweight_pallas.1} parent=5 // pred_check
        %p780 = pneg %p779
      $region66: #{sncrec_reweight_pallas.1} parent=5 // pred_check_branch
        %782 = sbr.rel (%p780) target = $region68
      $region67: #{sncrec_reweight_pallas.1} parent=5 // pred_region
        %s783 = ssub.s32 %s18, 2
        // Predicated region
        $region69: #{sncrec_reweight_pallas.1} parent=67 // pred_check
          %p784 = pneg %p219
        $region70: #{sncrec_reweight_pallas.1} parent=67 // pred_check_branch
          %786 = sbr.rel (%p784) target = $region72
        $region71: #{sncrec_reweight_pallas.1} parent=67 // pred_region
          %s787 = smul.u32 16, %s24
          %p788 = scmp.lt.s32.totalorder %s787, 31
          %s789 = scalar_select %p788, %s787, 31
          %s790 = smul.addr %s789, 2
          %s791 = scalar_lea.vmem %s7, %s790
        $region72: #{sncrec_reweight_pallas.1} parent=67 // pred_fallthru
          _
        // Predicated region
        $region73: #{sncrec_reweight_pallas.1} parent=67 // pred_check
          %p792 = pneg %p245
        $region74: #{sncrec_reweight_pallas.1} parent=67 // pred_check_branch
          %794 = sbr.rel (%p792) target = $region76
        $region75: #{sncrec_reweight_pallas.1} parent=67 // pred_region
          %s795 = smul.u32 16, %s24
          %p796 = scmp.lt.s32.totalorder %s795, 31
          %s797 = scalar_select %p796, %s795, 31
          %s798 = smul.addr %s797, 8
          %s799 = scalar_lea.vmem %s8, %s798
        $region76: #{sncrec_reweight_pallas.1} parent=67 // pred_fallthru
          _
        // Predicated region
        $region77: #{sncrec_reweight_pallas.1} parent=67 // pred_check
          %p800 = pneg %p271
        $region78: #{sncrec_reweight_pallas.1} parent=67 // pred_check_branch
          %802 = sbr.rel (%p800) target = $region80
        $region79: #{sncrec_reweight_pallas.1} parent=67 // pred_region
          %s803 = smul.u32 16, %s24
          %p804 = scmp.lt.s32.totalorder %s803, 31
          %s805 = scalar_select %p804, %s803, 31
          %s806 = smul.addr %s805, 8
          %s807 = scalar_lea.vmem %s9, %s806
        $region80: #{sncrec_reweight_pallas.1} parent=67 // pred_fallthru
          _
      $region68: #{sncrec_reweight_pallas.1} parent=5 // pred_fallthru
        _
    $region6: #{sncrec_reweight_pallas.1} parent=1 // loop_footer
      %s22 = sadd.s32 1, %s18
    $region7: #{sncrec_reweight_pallas.1} parent=1 // loop_footer_branch
      %17 = sbr.rel target = $region3
    $region8: #{sncrec_reweight_pallas.1} parent=1 // loop_exit
      _
    %808 = vsyncpa [#allocation4], 1
    %s809 = scalar_lea.sflag [#allocation4], 1
    %810 = vsyncpa %s809, 1

</llo_original>
